<compile_context>
chip_gen: v5e
topology: v5e:2x2
jax: 0.10.0
libtpu: 0.0.40
codegen_flags: <defaults>
</compile_context>

<pallas_src>
import jax
import jax.numpy as jnp
from jax.experimental import pallas as pl
from jax.experimental.pallas import tpu as pltpu


def _decoder_kernel(z_ref, w1_ref, b1_ref, w2_ref, b2_ref, out_ref):
    # fc1: (TB, L) @ (L, H) + (1, H), ReLU.  w1/b1 are VMEM-resident.
    h = jnp.dot(z_ref[...], w1_ref[...], preferred_element_type=jnp.float32)
    h = jnp.maximum(h + b1_ref[...].astype(jnp.float32), 0.0)
    # fc2: (TB, H) @ (H, TO) + (1, TO), streaming a lane-dense slab of w2.
    o = jnp.dot(h.astype(w2_ref.dtype), w2_ref[...],
                preferred_element_type=jnp.float32)
    out_ref[...] = (o + b2_ref[...].astype(jnp.float32)).astype(out_ref.dtype)


def _round_up(x, m):
    return (x + m - 1) // m * m


def _vmem_budget_bytes():
    """Usable scoped-VMEM budget for this chip generation (with headroom)."""
    cap = 128 * 1024 * 1024
    try:
        info = pltpu.get_tpu_info()
        cap = int(getattr(info, "vmem_capacity_bytes", cap))
    except Exception:
        pass
    # Leave headroom for compiler-internal scratch / semaphores; never request
    # the entire physical VMEM (v7x: 64 MiB -> 48 MiB; v5e/v6e: 128 -> 112 MiB).
    return max(cap - 16 * 1024 * 1024, cap // 2)


def atac_decoder(z, w1, b1, w2, b2, *, tb=None, to=None, out_dtype=None):
    """ATACDecoder forward: relu(z @ w1 + b1) @ w2 + b2.

    z : (B, L);  w1: (L, H), b1: (H,);  w2: (H, O), b2: (O,)
    Weights are passed pre-transposed to (in, out) so the kernel does plain
    matmuls (same math as PyTorch nn.Linear y = x @ W.T + b).  w2/b2 may be
    bf16 to halve the dominant HBM stream; accumulation stays f32.
    Returns (B, O) in `out_dtype` (default: z.dtype).
    """
    B, L = z.shape
    Lw, H = w1.shape
    Hw, O = w2.shape
    assert L == Lw and H == Hw, "shape mismatch between z/w1/w2"

    out_dtype = z.dtype if out_dtype is None else jnp.dtype(out_dtype)
    z_is = jnp.dtype(z.dtype).itemsize
    w1_is = jnp.dtype(w1.dtype).itemsize
    w2_is = jnp.dtype(w2.dtype).itemsize
    out_is = jnp.dtype(out_dtype).itemsize

    # Sublane multiple for the batch axis: 8 (f32), 16 (bf16), 32 (int8/fp8).
    sub = 8 * max(1, 4 // min(z_is, out_is))

    budget = _vmem_budget_bytes()

    # ---- batch tiling (avoid over-padding: re-balance tiles via cdiv) ----
    B_base = _round_up(B, sub)
    if tb is None:
        tb_target = 256 if B_base >= 256 else B_base
        tb_target = max(sub, min(tb_target, 512))
        n_b = pl.cdiv(B_base, tb_target)
        tb = _round_up(pl.cdiv(B_base, n_b), sub)
    else:
        assert tb % sub == 0, f"tb must be a multiple of {sub}"
        n_b = pl.cdiv(B_base, tb)
    B_pad = n_b * tb

    # ---- output tiling: lane-dense, sized to the generation's VMEM budget ----
    O_128 = _round_up(O, 128)
    resident = 2 * (tb * L * z_is + (L * H + H) * w1_is)        # z, w1, b1 (2x-buffered)
    per_col = 2 * (H * w2_is + w2_is + tb * out_is)             # w2, b2, out per column
    if to is None:
        avail = int(budget * 0.75) - resident
        to_target = max(128, min(avail // max(per_col, 1), 8192, O_128))
        to_target = max(128, (to_target // 128) * 128)
        n_o = pl.cdiv(O_128, to_target)
        to = _round_up(pl.cdiv(O_128, n_o), 128)
    else:
        assert to % 128 == 0, "to must be a multiple of 128"
        n_o = pl.cdiv(O_128, to)
    O_pad = n_o * to

    z_p = z if B_pad == B else jnp.pad(z, ((0, B_pad - B), (0, 0)))
    w2_p = w2 if O_pad == O else jnp.pad(w2, ((0, 0), (0, O_pad - O)))
    b2_p = (b2 if O_pad == O else jnp.pad(b2, (0, O_pad - O))).reshape(1, O_pad)
    b1_2d = b1.reshape(1, H)

    # Batch innermost -> w2 block index constant across consecutive steps
    # (fetched exactly once per O tile); O leading -> megacore shards O.
    grid = (n_o, n_b)

    # Itemsize-aware VMEM need, counting 2x buffering of every operand.
    vmem_need = resident + per_col * to
    vmem_limit = int(min(max(vmem_need * 3 // 2, 32 * 1024 * 1024), budget))

    cost = pl.CostEstimate(
        # fc1 is recomputed once per output tile (tiny vs. fc2).
        flops=2 * B_pad * (n_o * L * H + H * O_pad),
        transcendentals=0,
        bytes_accessed=(n_o * B_pad * L * z_is          # z re-read per O tile
                        + (L * H + H) * w1_is           # w1/b1 once
                        + (H * O_pad + O_pad) * w2_is   # w2/b2 streamed once
                        + B_pad * O_pad * out_is),      # output writeback
    )

    out_p = pl.pallas_call(
        _decoder_kernel,
        out_shape=jax.ShapeDtypeStruct((B_pad, O_pad), out_dtype),
        grid_spec=pltpu.PrefetchScalarGridSpec(
            num_scalar_prefetch=0,
            grid=grid,
            in_specs=[
                pl.BlockSpec((tb, L), lambda j, i: (i, 0)),   # z : tiled over batch
                pl.BlockSpec((L, H), lambda j, i: (0, 0)),    # w1: resident
                pl.BlockSpec((1, H), lambda j, i: (0, 0)),    # b1: resident
                pl.BlockSpec((H, to), lambda j, i: (0, j)),   # w2: streamed once over O
                pl.BlockSpec((1, to), lambda j, i: (0, j)),   # b2: streamed once over O
            ],
            out_specs=pl.BlockSpec((tb, to), lambda j, i: (i, j)),
        ),
        compiler_params=pltpu.CompilerParams(
            dimension_semantics=("parallel", "parallel"),
            vmem_limit_bytes=vmem_limit,
        ),
        cost_estimate=cost,
    )(z_p, w1, b1_2d, w2_p, b2_p)

    if B_pad != B or O_pad != O:
        out_p = out_p[:B, :O]
    return out_p


def _ref_decoder(z, w1, b1, w2, b2):
    h = jnp.maximum(z @ w1 + b1, 0.0)
    return h @ w2 + b2


if __name__ == "__main__":
    # Small but non-trivial shapes: batch not a multiple of 8, output not a
    # multiple of 128 -> exercises padding + slice-back; explicit small tiles
    # exercise a real multi-step grid with the new (O, batch) ordering.
    latent_dim, hidden_dim, output_dim = 16, 32, 300
    batch = 20

    key = jax.random.PRNGKey(0)
    kz, k1, kb1, k2, kb2 = jax.random.split(key, 5)

    z = jax.random.normal(kz, (batch, latent_dim), dtype=jnp.float32)
    bound1 = 1.0 / (latent_dim ** 0.5)
    w1 = jax.random.uniform(k1, (latent_dim, hidden_dim), minval=-bound1,
                            maxval=bound1, dtype=jnp.float32)
    b1 = jax.random.uniform(kb1, (hidden_dim,), minval=-bound1, maxval=bound1,
                            dtype=jnp.float32)
    bound2 = 1.0 / (hidden_dim ** 0.5)
    w2 = jax.random.uniform(k2, (hidden_dim, output_dim), minval=-bound2,
                            maxval=bound2, dtype=jnp.float32)
    b2 = jax.random.uniform(kb2, (output_dim,), minval=-bound2, maxval=bound2,
                            dtype=jnp.float32)

    ref = _ref_decoder(z, w1, b1, w2, b2)

    # 1) default (auto) tiling, f32 end-to-end
    out_auto = jax.block_until_ready(atac_decoder(z, w1, b1, w2, b2))
    assert out_auto.shape == (batch, output_dim)
    assert jnp.allclose(out_auto, ref, atol=1e-4, rtol=1e-4), "auto-tile mismatch"

    # 2) explicit small tiles -> multi-step (O, batch) grid with padding on both axes
    out_tiled = jax.block_until_ready(atac_decoder(z, w1, b1, w2, b2, tb=8, to=128))
    assert out_tiled.shape == (batch, output_dim)
    assert jnp.allclose(out_tiled, ref, atol=1e-4, rtol=1e-4), "tiled mismatch"

    # 3) bf16-streamed weights (halves the dominant w2 HBM traffic), f32 accumulation
    out_bf16 = jax.block_until_ready(
        atac_decoder(z, w1.astype(jnp.bfloat16), b1.astype(jnp.bfloat16),
                     w2.astype(jnp.bfloat16), b2.astype(jnp.bfloat16)))
    assert out_bf16.shape == (batch, output_dim)
    assert jnp.allclose(out_bf16, ref, atol=7e-2, rtol=5e-2), "bf16 mismatch"

    print("KERNEL_OK")
</pallas_src>

<mosaic_0001>
module attributes {stable_mosaic.version = 11 : i64} {
  func.func @_decoder_kernel(%arg0: i32, %arg1: i32, %arg2: memref<24x16xf32, #tpu.memory_space<vmem>>, %arg3: memref<16x32xf32, #tpu.memory_space<vmem>>, %arg4: memref<1x32xf32, #tpu.memory_space<vmem>>, %arg5: memref<32x384xf32, #tpu.memory_space<vmem>>, %arg6: memref<1x384xf32, #tpu.memory_space<vmem>>, %arg7: memref<24x384xf32, #tpu.memory_space<vmem>>) attributes {dimension_semantics = [#tpu.dimension_semantics<parallel>, #tpu.dimension_semantics<parallel>], iteration_bounds = array<i64: 1, 1>, scalar_prefetch = 0 : i64, scratch_operands = 0 : i64, tpu.core_type = #tpu.core_type<tc>, window_params = [{transform_indices = @transform_0, window_bounds = array<i64: 24, 16>}, {pipeline_mode = #tpu.pipeline_mode<synchronous>, transform_indices = @transform_1, window_bounds = array<i64: 16, 32>}, {pipeline_mode = #tpu.pipeline_mode<synchronous>, transform_indices = @transform_2, window_bounds = array<i64: 1, 32>}, {transform_indices = @transform_3, window_bounds = array<i64: 32, 384>}, {transform_indices = @transform_4, window_bounds = array<i64: 1, 384>}, {transform_indices = @transform_5, window_bounds = array<i64: 24, 384>}]} {
    %c0 = arith.constant 0 : index
    %c0_0 = arith.constant 0 : index
    %0 = vector.load %arg2[%c0, %c0_0] : memref<24x16xf32, #tpu.memory_space<vmem>>, vector<24x16xf32>
    %c0_1 = arith.constant 0 : index
    %c0_2 = arith.constant 0 : index
    %1 = vector.load %arg3[%c0_1, %c0_2] : memref<16x32xf32, #tpu.memory_space<vmem>>, vector<16x32xf32>
    %cst = arith.constant dense<0.000000e+00> : vector<24x32xf32>
    %2 = tpu.matmul %0, %1, %cst {dimension_numbers = #tpu.dot_dimension_numbers<[1], [0], [0], [1], [0, 0, 1, 1], [], []>} : vector<24x16xf32>, vector<16x32xf32>, vector<24x32xf32> -> vector<24x32xf32>
    %c0_3 = arith.constant 0 : index
    %c0_4 = arith.constant 0 : index
    %3 = vector.load %arg4[%c0_3, %c0_4] : memref<1x32xf32, #tpu.memory_space<vmem>>, vector<1x32xf32>
    %4 = vector.broadcast %3 : vector<1x32xf32> to vector<24x32xf32>
    %5 = arith.addf %2, %4 : vector<24x32xf32>
    %cst_5 = arith.constant 0.000000e+00 : f32
    %6 = vector.broadcast %cst_5 : f32 to vector<24x32xf32>
    %7 = arith.maximumf %5, %6 : vector<24x32xf32>
    %c0_6 = arith.constant 0 : index
    %c0_7 = arith.constant 0 : index
    %8 = vector.load %arg5[%c0_6, %c0_7] : memref<32x384xf32, #tpu.memory_space<vmem>>, vector<32x384xf32>
    %cst_8 = arith.constant dense<0.000000e+00> : vector<24x384xf32>
    %9 = tpu.matmul %7, %8, %cst_8 {dimension_numbers = #tpu.dot_dimension_numbers<[1], [0], [0], [1], [0, 0, 1, 1], [], []>} : vector<24x32xf32>, vector<32x384xf32>, vector<24x384xf32> -> vector<24x384xf32>
    %c0_9 = arith.constant 0 : index
    %c0_10 = arith.constant 0 : index
    %10 = vector.load %arg6[%c0_9, %c0_10] : memref<1x384xf32, #tpu.memory_space<vmem>>, vector<1x384xf32>
    %11 = vector.broadcast %10 : vector<1x384xf32> to vector<24x384xf32>
    %12 = arith.addf %9, %11 : vector<24x384xf32>
    %c0_11 = arith.constant 0 : index
    %c0_12 = arith.constant 0 : index
    %13 = vector.load %arg7[%c0_11, %c0_12] : memref<24x384xf32, #tpu.memory_space<vmem>>, vector<24x384xf32>
    tpu.vector_store %arg7[%c0_11, %c0_12], %12 {strides = array<i32>} : memref<24x384xf32, #tpu.memory_space<vmem>>, vector<24x384xf32>,
    return
  }
  func.func @transform_0(%arg0: i32, %arg1: i32) -> (i32, i32) {
    %c0_i32 = arith.constant 0 : i32
    %c0_i32_0 = arith.constant 0 : i32
    return %arg1, %c0_i32 : i32, i32
  }
  func.func @transform_1(%arg0: i32, %arg1: i32) -> (i32, i32) {
    %c0_i32 = arith.constant 0 : i32
    %c0_i32_0 = arith.constant 0 : i32
    %c0_i32_1 = arith.constant 0 : i32
    return %c0_i32, %c0_i32_0 : i32, i32
  }
  func.func @transform_2(%arg0: i32, %arg1: i32) -> (i32, i32) {
    %c0_i32 = arith.constant 0 : i32
    %c0_i32_0 = arith.constant 0 : i32
    %c0_i32_1 = arith.constant 0 : i32
    return %c0_i32, %c0_i32_0 : i32, i32
  }
  func.func @transform_3(%arg0: i32, %arg1: i32) -> (i32, i32) {
    %c0_i32 = arith.constant 0 : i32
    %c0_i32_0 = arith.constant 0 : i32
    return %c0_i32, %arg0 : i32, i32
  }
  func.func @transform_4(%arg0: i32, %arg1: i32) -> (i32, i32) {
    %c0_i32 = arith.constant 0 : i32
    %c0_i32_0 = arith.constant 0 : i32
    return %c0_i32, %arg0 : i32, i32
  }
  func.func @transform_5(%arg0: i32, %arg1: i32) -> (i32, i32) {
    %c0_i32 = arith.constant 0 : i32
    return %arg1, %arg0 : i32, i32
  }
}

</mosaic_0001>

<llo_original>
// kernel: tpu_custom_call.1
$region0: #{tpu_custom_call.1}
  #allocation0 [shape = 'u32[]', space=smem, size = 0x4, offset = 0x4, fixed_abs, tag = 'smem constant byte address 0x4 - core index']
  #allocation1 [shape = 'u32[72,128]{1,0:T(1,128)}', space=vmem, size = 0x9000, scoped, tag = 'internal scratch']
  %s0 = inlined_call_operand.vmem [shape: f32[24,16], index: 0, kind: input, shape index: {}]
  %s1 = inlined_call_operand.vmem [shape: f32[16,32], index: 1, kind: input, shape index: {}]
  %s2 = inlined_call_operand.vmem [shape: f32[1,32], index: 2, kind: input, shape index: {}]
  %s3 = inlined_call_operand.hbm [shape: f32[32,384], index: 3, kind: input, shape index: {}]
  %s4 = inlined_call_operand.vmem [shape: f32[1,384], index: 4, kind: input, shape index: {}]
  %s5 = inlined_call_operand.hbm [shape: f32[24,384], index: 5, kind: output, shape index: {}]
  %s6 = sld [smem:[#allocation0]]
  $region34: #{tpu_custom_call.1} parent=0
    _
  %s8 = ssub.s32 1, %s6
  %s9 = scalar_select 0, %s8, %s6
  $region1: #{tpu_custom_call.1} parent=0
    #allocation2 [shape = 'u8[49152]{0}', space=vmem, size = 0xc000, scoped, tag = 'input window, operand 3, single buffered']
    #allocation3 [shape = 's32[1]{0}', space=sflag, size = 0x4, scoped, tag = 'scoped memory for tpu_custom_call.1']
    #allocation4 [shape = 's32[1]{0}', space=sflag, size = 0x4, scoped, tag = 'scoped memory for tpu_custom_call.1']
    #allocation5 [shape = 'u8[36864]{0}', space=vmem, size = 0x9000, scoped, tag = 'output window, operand 0, single buffered']
    %10 = vsyncpa [#allocation3], 0
    %11 = vsyncpa [#allocation4], 0
    // Predicated region
    $region2: #{tpu_custom_call.1} parent=1 // pred_check
      _
    $region3: #{tpu_custom_call.1} parent=1 // pred_check_branch
      %13 = sbr.rel (0) target = $region5
    $region4: #{tpu_custom_call.1} parent=1 // pred_region
      _
    $region5: #{tpu_custom_call.1} parent=1 // pred_fallthru
      _
    // Predicated region
    $region6: #{tpu_custom_call.1} parent=1 // pred_check
      _
    $region7: #{tpu_custom_call.1} parent=1 // pred_check_branch
      %15 = sbr.rel (0) target = $region9
    $region8: #{tpu_custom_call.1} parent=1 // pred_region
      _
    $region9: #{tpu_custom_call.1} parent=1 // pred_fallthru
      _
    // Predicated region
    $region10: #{tpu_custom_call.1} parent=1 // pred_check
      _
    $region11: #{tpu_custom_call.1} parent=1 // pred_check_branch
      %17 = sbr.rel (0) target = $region13
    $region12: #{tpu_custom_call.1} parent=1 // pred_region
      _
    $region13: #{tpu_custom_call.1} parent=1 // pred_fallthru
      _
    // Predicated region
    $region14: #{tpu_custom_call.1} parent=1 // pred_check
      _
    $region15: #{tpu_custom_call.1} parent=1 // pred_check_branch
      %19 = sbr.rel (0) target = $region17
    $region16: #{tpu_custom_call.1} parent=1 // pred_region
      %21 = vsyncadd [#allocation3], 0
      %s22 = sshll.u32 %s3, 4
      %s23 = int_to_ptr.hbm [resolvable:$true] %s22
      %s24 = sshll.u32 [#allocation2], 4
      %s25 = int_to_ptr.vmem [resolvable:$true] %s24
      %30 = dma.hbm_to_vmem [thread:$0]  %s23, 1536, %s25, [#allocation3], 384, 384, 24
    $region17: #{tpu_custom_call.1} parent=1 // pred_fallthru
      _
    // Predicated region
    $region18: #{tpu_custom_call.1} parent=1 // pred_check
      _
    $region19: #{tpu_custom_call.1} parent=1 // pred_check_branch
      %32 = sbr.rel (0) target = $region21
    $region20: #{tpu_custom_call.1} parent=1 // pred_region
      _
    $region21: #{tpu_custom_call.1} parent=1 // pred_fallthru
      _
    // Predicated region
    $region22: #{tpu_custom_call.1} parent=1 // pred_check
      _
    $region23: #{tpu_custom_call.1} parent=1 // pred_check_branch
      %34 = sbr.rel (0) target = $region25
    $region24: #{tpu_custom_call.1} parent=1 // pred_region
      %36 = dma.done [#allocation3], 1536
    $region25: #{tpu_custom_call.1} parent=1 // pred_fallthru
      _
    %v37 = vld [vmem:[%s0] sm:$0xff]
    %v38 = vld [vmem:[%s0 + $0x8] sm:$0xff]
    %v39 = vld [vmem:[%s0 + $0x10] sm:$0xff]
    %v40 = vld [vmem:[%s1] sm:$0xff]
    %v41 = vld [vmem:[%s1 + $0x8] sm:$0xff]
    %v42 = vld [vmem:[%s2] sm:$0x1]
    %v44 = vperm.slane %v42, 0
    %vm46 = vcmask 130048
    %v48 = vsel %vm46, %v37, 0
    %v51 = vsel %vm46, %v38, 0
    %v54 = vsel %vm46, %v39, 0
    %56 = vmatpush.msra.mxu0 0.0
    %57 = vmatpush.msra.mxu0 0.0
    %58 = vmatpush.msra.mxu0 0.0
    %59 = vmatpush.msra.mxu0 0.0
    %60 = vmatpush.msra.mxu0 0.0
    %61 = vmatpush.msra.mxu0 0.0
    %62 = vmatpush.msra.mxu0 0.0
    %63 = vmatpush.msra.mxu0 0.0
    %64 = vmatpush.msra.mxu0 0.0
    %65 = vmatpush.msra.mxu0 0.0
    %66 = vmatpush.msra.mxu0 0.0
    %67 = vmatpush.msra.mxu0 0.0
    %68 = vmatpush.msra.mxu0 0.0
    %69 = vmatpush.msra.mxu0 0.0
    %70 = vmatpush.msra.mxu0 %v41
    %71 = vmatpush.msra.mxu0 %v40
    %72 = vmatmul.f32.gmra.mxu0 %v48
    %v73 = vpop.f32.mrf.mxu0
    %v74 = vadd.f32 %v44, %v73
    %75 = vmatmul.f32.gmra.mxu0 %v51
    %v76 = vpop.f32.mrf.mxu0
    %v77 = vadd.f32 %v44, %v76
    %78 = vmatmul.f32.gmra.mxu0 %v54
    %v79 = vpop.f32.mrf.mxu0
    %v80 = vadd.f32 %v44, %v79
    %81 = vdwg.mxu0
    %v82 = vmax.f32 %v74, 0.0
    %v83 = vmax.f32 %v77, 0.0
    %v84 = vmax.f32 %v80, 0.0
    %v85 = vld [vmem:[#allocation2] sm:$0xff]
    %v86 = vld [vmem:[#allocation2 + $0x8] sm:$0xff]
    %v87 = vld [vmem:[#allocation2 + $0x10] sm:$0xff]
    %v88 = vld [vmem:[#allocation2 + $0x18] sm:$0xff]
    %v89 = vld [vmem:[#allocation2 + $0x20] sm:$0xff]
    %v90 = vld [vmem:[#allocation2 + $0x28] sm:$0xff]
    %v91 = vld [vmem:[#allocation2 + $0x30] sm:$0xff]
    %v92 = vld [vmem:[#allocation2 + $0x38] sm:$0xff]
    %v93 = vld [vmem:[#allocation2 + $0x40] sm:$0xff]
    %v94 = vld [vmem:[#allocation2 + $0x48] sm:$0xff]
    %v95 = vld [vmem:[#allocation2 + $0x50] sm:$0xff]
    %v96 = vld [vmem:[#allocation2 + $0x58] sm:$0xff]
    %v97 = vld [vmem:[%s4] sm:$0x7]
    %v99 = vperm.slane %v97, 0
    %v100 = vperm.slane %v97, 1
    %v101 = vperm.slane %v97, 2
    %vm105 = vcmask 261120
    %v107 = vsel %vm105, %v82, 0
    %v110 = vsel %vm105, %v83, 0
    %v113 = vsel %vm105, %v84, 0
    %115 = vmatpush.msra.mxu0 0.0
    %116 = vmatpush.msra.mxu0 0.0
    %117 = vmatpush.msra.mxu0 0.0
    %118 = vmatpush.msra.mxu0 0.0
    %119 = vmatpush.msra.mxu0 0.0
    %120 = vmatpush.msra.mxu0 0.0
    %121 = vmatpush.msra.mxu0 0.0
    %122 = vmatpush.msra.mxu0 0.0
    %123 = vmatpush.msra.mxu0 0.0
    %124 = vmatpush.msra.mxu0 0.0
    %125 = vmatpush.msra.mxu0 0.0
    %126 = vmatpush.msra.mxu0 0.0
    %127 = vmatpush.msra.mxu0 %v94
    %128 = vmatpush.msra.mxu0 %v91
    %129 = vmatpush.msra.mxu0 %v88
    %130 = vmatpush.msra.mxu0 %v85
    %131 = vmatmul.f32.gmra.mxu0 %v107
    %v132 = vpop.f32.mrf.mxu0
    %v133 = vadd.f32 %v99, %v132
    %134 = vmatmul.f32.gmra.mxu0 %v110
    %v135 = vpop.f32.mrf.mxu0
    %v136 = vadd.f32 %v99, %v135
    %137 = vmatmul.f32.gmra.mxu0 %v113
    %v138 = vpop.f32.mrf.mxu0
    %v139 = vadd.f32 %v99, %v138
    %140 = vdwg.mxu0
    %141 = vmatpush.msra.mxu0 0.0
    %142 = vmatpush.msra.mxu0 0.0
    %143 = vmatpush.msra.mxu0 0.0
    %144 = vmatpush.msra.mxu0 0.0
    %145 = vmatpush.msra.mxu0 0.0
    %146 = vmatpush.msra.mxu0 0.0
    %147 = vmatpush.msra.mxu0 0.0
    %148 = vmatpush.msra.mxu0 0.0
    %149 = vmatpush.msra.mxu0 0.0
    %150 = vmatpush.msra.mxu0 0.0
    %151 = vmatpush.msra.mxu0 0.0
    %152 = vmatpush.msra.mxu0 0.0
    %153 = vmatpush.msra.mxu0 %v95
    %154 = vmatpush.msra.mxu0 %v92
    %155 = vmatpush.msra.mxu0 %v89
    %156 = vmatpush.msra.mxu0 %v86
    %157 = vmatmul.f32.gmra.mxu0 %v107
    %v158 = vpop.f32.mrf.mxu0
    %v159 = vadd.f32 %v100, %v158
    %160 = vmatmul.f32.gmra.mxu0 %v110
    %v161 = vpop.f32.mrf.mxu0
    %v162 = vadd.f32 %v100, %v161
    %163 = vmatmul.f32.gmra.mxu0 %v113
    %v164 = vpop.f32.mrf.mxu0
    %v165 = vadd.f32 %v100, %v164
    %166 = vdwg.mxu0
    %167 = vmatpush.msra.mxu0 0.0
    %168 = vmatpush.msra.mxu0 0.0
    %169 = vmatpush.msra.mxu0 0.0
    %170 = vmatpush.msra.mxu0 0.0
    %171 = vmatpush.msra.mxu0 0.0
    %172 = vmatpush.msra.mxu0 0.0
    %173 = vmatpush.msra.mxu0 0.0
    %174 = vmatpush.msra.mxu0 0.0
    %175 = vmatpush.msra.mxu0 0.0
    %176 = vmatpush.msra.mxu0 0.0
    %177 = vmatpush.msra.mxu0 0.0
    %178 = vmatpush.msra.mxu0 0.0
    %179 = vmatpush.msra.mxu0 %v96
    %180 = vmatpush.msra.mxu0 %v93
    %181 = vmatpush.msra.mxu0 %v90
    %182 = vmatpush.msra.mxu0 %v87
    %183 = vmatmul.f32.gmra.mxu0 %v107
    %v184 = vpop.f32.mrf.mxu0
    %v185 = vadd.f32 %v101, %v184
    %186 = vmatmul.f32.gmra.mxu0 %v110
    %v187 = vpop.f32.mrf.mxu0
    %v188 = vadd.f32 %v101, %v187
    %189 = vmatmul.f32.gmra.mxu0 %v113
    %v190 = vpop.f32.mrf.mxu0
    %v191 = vadd.f32 %v101, %v190
    %192 = vdwg.mxu0
    %193 = vst [vmem:[#allocation5] sm:$0xff] %v133
    %194 = vst [vmem:[#allocation5 + $0x8] sm:$0xff] %v159
    %195 = vst [vmem:[#allocation5 + $0x10] sm:$0xff] %v185
    %196 = vst [vmem:[#allocation5 + $0x18] sm:$0xff] %v136
    %197 = vst [vmem:[#allocation5 + $0x20] sm:$0xff] %v162
    %198 = vst [vmem:[#allocation5 + $0x28] sm:$0xff] %v188
    %199 = vst [vmem:[#allocation5 + $0x30] sm:$0xff] %v139
    %200 = vst [vmem:[#allocation5 + $0x38] sm:$0xff] %v165
    %201 = vst [vmem:[#allocation5 + $0x40] sm:$0xff] %v191
    // Predicated region
    $region26: #{tpu_custom_call.1} parent=1 // pred_check
      _
    $region27: #{tpu_custom_call.1} parent=1 // pred_check_branch
      %203 = sbr.rel (0) target = $region29
    $region28: #{tpu_custom_call.1} parent=1 // pred_region
      %205 = vsyncadd [#allocation4], 0
      %s206 = sshll.u32 [#allocation5], 4
      %s207 = int_to_ptr.vmem [resolvable:$true] %s206
      %s208 = sshll.u32 %s5, 4
      %s209 = int_to_ptr.hbm [resolvable:$true] %s208
      %214 = dma.vmem_to_hbm [thread:$0]  %s207, 1152, %s209, [#allocation4], 384, 384, 24
    $region29: #{tpu_custom_call.1} parent=1 // pred_fallthru
      _
    // Predicated region
    $region30: #{tpu_custom_call.1} parent=1 // pred_check
      _
    $region31: #{tpu_custom_call.1} parent=1 // pred_check_branch
      %216 = sbr.rel (0) target = $region33
    $region32: #{tpu_custom_call.1} parent=1 // pred_region
      %218 = dma.done [#allocation4], 1152
    $region33: #{tpu_custom_call.1} parent=1 // pred_fallthru
      _
    %219 = vsyncpa [#allocation3], 1
    %220 = vsyncpa [#allocation4], 1

</llo_original>
